<compile_context>
chip_gen: v7x
topology: tpu7x:2x2x1
jax: 0.10.0
libtpu: 0.0.40
codegen_flags: <defaults>
</compile_context>

<pallas_src>
import functools

import jax
import jax.numpy as jnp
from jax import lax
from jax.experimental import pallas as pl
from jax.experimental.pallas import tpu as pltpu


# Max xs length the kernel reduces with an unrolled scalar loop; larger
# batches are pre-summed on the wrapper side (jnp.sum) into a single delta.
_MAX_UNROLL = 32


# ----------------------------- kernels ------------------------------------

def _update_forward_kernel(step_ref, xs_ref, new_step_ref, value_ref):
    """Fused: new_step = step + sum(xs); value = float32(new_step).

    All refs live in SMEM; the whole kernel is a handful of scalar-slot ops.
    """
    n = xs_ref.shape[0]  # static (bucketed, <= _MAX_UNROLL)

    def body(i, acc):
        return acc + xs_ref[i]

    total = lax.fori_loop(0, n, body, step_ref[0], unroll=True)
    new_step_ref[0] = total
    value_ref[0] = total.astype(jnp.float32)


def _forward_kernel(step_ref, value_ref):
    """Value at the current step. Base class: return step as float32."""
    value_ref[0] = step_ref[0].astype(jnp.float32)


# ----------------------------- wrappers ------------------------------------

_SMEM_SPEC = pl.BlockSpec(memory_space=pltpu.SMEM)


def _update_forward_call(step, xs):
    return pl.pallas_call(
        _update_forward_kernel,
        out_shape=(
            jax.ShapeDtypeStruct((1,), jnp.int32),    # new step (aliases input 0)
            jax.ShapeDtypeStruct((1,), jnp.float32),  # value at new step
        ),
        in_specs=[_SMEM_SPEC, _SMEM_SPEC],
        out_specs=(_SMEM_SPEC, _SMEM_SPEC),
        input_output_aliases={0: 0},  # step buffer updated in place
    )(step, xs)


# Small-batch path: unrolled scalar reduction inside the kernel.
# Donate the step buffer so the alias is realized without an XLA copy.
_pallas_update_forward = jax.jit(_update_forward_call, donate_argnums=0)


# Large-batch path: pre-sum xs on the VPU/XLU (plain XLA) inside the same jit,
# then feed the kernel a single (1,) delta — keeps the kernel scalar work O(1)
# and avoids 1D SMEM padding blowup for big N.
@functools.partial(jax.jit, donate_argnums=0)
def _pallas_update_forward_presum(step, xs):
    delta = jnp.sum(xs, dtype=jnp.int32).reshape(1)
    return _update_forward_call(step, delta)


@jax.jit
def _pallas_forward(step):
    return pl.pallas_call(
        _forward_kernel,
        out_shape=jax.ShapeDtypeStruct((1,), jnp.float32),
        in_specs=[_SMEM_SPEC],
        out_specs=_SMEM_SPEC,
    )(step)


# Cached device constants for common deltas (avoids a 4-byte H2D copy + buffer
# allocation on every update(x) call; x=1 is the overwhelmingly common case).
_DELTA_CACHE: dict[int, jnp.ndarray] = {}


def _get_delta(x: int) -> jnp.ndarray:
    x = int(x)
    d = _DELTA_CACHE.get(x)
    if d is None:
        d = jnp.full((1,), x, dtype=jnp.int32)
        _DELTA_CACHE[x] = d
    return d


class Scheduler:
    """JAX/Pallas port of the PyTorch Scheduler base class.

    State (the step counter) is a (1,) int32 device buffer held in the object.
    `update` / `update_batch` advance it in place (aliased, donated output) and
    return the value at the new step; `forward` returns the value at the
    current step (served from a cache on the hot path — the fused update kernel
    already emits it).
    """

    def __init__(self, init_step: int = 0):
        self.step = jnp.full((1,), init_step, dtype=jnp.int32)
        self._value = None  # cached float32 value at the current step

    def forward(self) -> jnp.ndarray:
        """Return the value at the current step as a float32 tensor."""
        if self._value is None:  # cold cache: one-off cast kernel
            self._value = _pallas_forward(self.step)
        return self._value

    __call__ = forward

    def update(self, x: int = 1) -> jnp.ndarray:
        """Advance the scheduler by `x` steps (single fused kernel launch)."""
        self.step, self._value = _pallas_update_forward(self.step, _get_delta(x))
        return self._value

    def update_batch(self, xs) -> jnp.ndarray:
        """Advance the scheduler by every entry of `xs` in ONE kernel launch."""
        xs = jnp.asarray(xs, dtype=jnp.int32).reshape(-1)
        n = xs.shape[0]
        bucket = max(1, pl.next_power_of_2(n))
        if bucket != n:
            # Zero padding leaves the sum unchanged; bucketing bounds the set
            # of compiled shapes to O(log N) variants.
            xs = jnp.pad(xs, (0, bucket - n))
        if bucket <= _MAX_UNROLL:
            self.step, self._value = _pallas_update_forward(self.step, xs)
        else:
            self.step, self._value = _pallas_update_forward_presum(self.step, xs)
        return self._value


# ----------------------------- demo ----------------------------------------

if __name__ == "__main__":
    key = jax.random.PRNGKey(0)
    init_step = 0
    # Deterministic sequence of update sizes (small shapes).
    k1, k2 = jax.random.split(key)
    update_sizes = jax.random.randint(k1, (8,), 1, 5, dtype=jnp.int32)
    big_update_sizes = jax.random.randint(k2, (40,), 1, 3, dtype=jnp.int32)

    sched = Scheduler(init_step)

    v0 = sched.forward()
    jax.block_until_ready(v0)
    assert v0.shape == (1,) and v0.dtype == jnp.float32
    assert float(v0[0]) == float(init_step)

    # All 8 updates folded into a single fused update+forward kernel launch.
    v1 = sched.update_batch(update_sizes)
    jax.block_until_ready(v1)
    expected = init_step + int(jnp.sum(update_sizes))
    assert float(v1[0]) == float(expected), (float(v1[0]), expected)

    # Single-step path (cached device delta, one fused launch).
    v2 = sched.update(3)
    jax.block_until_ready(v2)
    expected += 3
    assert float(v2[0]) == float(expected), (float(v2[0]), expected)

    # Repeat single-step: delta constant is reused (no H2D copy).
    v2b = sched.update(3)
    jax.block_until_ready(v2b)
    expected += 3
    assert float(v2b[0]) == float(expected), (float(v2b[0]), expected)

    # Large batch exercises the pre-sum path (kernel sees a single delta).
    v3 = sched.update_batch(big_update_sizes)
    jax.block_until_ready(v3)
    expected += int(jnp.sum(big_update_sizes))
    assert float(v3[0]) == float(expected), (float(v3[0]), expected)

    # forward() after updates is served from the cache — no kernel launch.
    v4 = sched.forward()
    jax.block_until_ready(v4)
    assert float(v4[0]) == float(expected), (float(v4[0]), expected)

    print("KERNEL_OK")
</pallas_src>

<mosaic_0001>
module attributes {stable_mosaic.version = 11 : i64} {
  func.func @_forward_kernel(%arg0: memref<1xi32, #tpu.memory_space<smem>>, %arg1: memref<1xf32, #tpu.memory_space<smem>>) attributes {dimension_semantics = [], scalar_prefetch = 0 : i64, scratch_operands = 0 : i64, tpu.core_type = #tpu.core_type<tc>} {
    %c0 = arith.constant 0 : index
    %0 = memref.load %arg0[%c0] : memref<1xi32, #tpu.memory_space<smem>>
    %1 = arith.sitofp %0 : i32 to f32
    %c0_0 = arith.constant 0 : index
    %2 = memref.load %arg1[%c0_0] : memref<1xf32, #tpu.memory_space<smem>>
    memref.store %1, %arg1[%c0_0] : memref<1xf32, #tpu.memory_space<smem>>
    return
  }
}

</mosaic_0001>

<llo_original>
// kernel: _pallas_forward.1
$region0: #{_pallas_forward.1}
  #allocation0 [shape = 'u32[]', space=smem, size = 0x4, offset = 0x4, fixed_abs, tag = 'smem constant byte address 0x4 - core index']
  #allocation1 [shape = 'u32[144,128]{1,0:T(1,128)}', space=vmem, size = 0x12000, scoped, tag = 'internal scratch']
  #allocation2 [shape = 's32[1]{0:T(128)S(6)}', space=smem, size = 0x200, scoped, tag = 'scoped memory for _pallas_forward.1']
  %s0 = inlined_call_operand.<no memory space> [shape: s32[1], index: 0, kind: input, shape index: {}]
  %s1 = inlined_call_operand.hbm [shape: f32[1], index: 1, kind: output, shape index: {}]
  %s2 = sld [smem:[#allocation0]]
  $region14: #{_pallas_forward.1} parent=0
    _
  %s4 = ssub.s32 1, %s2
  %s5 = scalar_select 0, %s4, %s2
  %6 = sst [smem:[#allocation2]] %s0
  $region1: #{_pallas_forward.1} parent=0
    #allocation3 [shape = 'u8[512]{0}', space=smem, size = 0x200, scoped, tag = 'output window, operand 0, single buffered']
    #allocation4 [shape = 's32[1]{0}', space=sflag, size = 0x4, scoped, tag = 'scoped memory for _pallas_forward.1']
    %7 = vsyncpa [#allocation4], 0
    // Predicated region
    $region2: #{_pallas_forward.1} parent=1 // pred_check
      _
    $region3: #{_pallas_forward.1} parent=1 // pred_check_branch
      %9 = sbr.rel (0) target = $region5
    $region4: #{_pallas_forward.1} parent=1 // pred_region
      _
    $region5: #{_pallas_forward.1} parent=1 // pred_fallthru
      _
    %s10 = sld [smem:[#allocation2]]
    %s11 = scvt.s32.f32 %s10
    %s12 = scalar_lea.smem [#allocation3], 0
    %13 = sst [smem:[%s12]] %s11
    // Predicated region
    $region6: #{_pallas_forward.1} parent=1 // pred_check
      _
    $region7: #{_pallas_forward.1} parent=1 // pred_check_branch
      %15 = sbr.rel (0) target = $region9
    $region8: #{_pallas_forward.1} parent=1 // pred_region
      %s17 = ssub.s32 16, 16
      %18 = vsyncadd [#allocation4], %s17
      %21 = dma.smem_to_hbm [#allocation3], 16, %s1, [#allocation4]
    $region9: #{_pallas_forward.1} parent=1 // pred_fallthru
      _
    // Predicated region
    $region10: #{_pallas_forward.1} parent=1 // pred_check
      _
    $region11: #{_pallas_forward.1} parent=1 // pred_check_branch
      %23 = sbr.rel (0) target = $region13
    $region12: #{_pallas_forward.1} parent=1 // pred_region
      %24 = dma.done [#allocation4], 16
    $region13: #{_pallas_forward.1} parent=1 // pred_fallthru
      _
    %25 = sfence
    %26 = vsyncpa [#allocation4], 1

</llo_original>
